<compile_context>
chip_gen: v7x
topology: tpu7x:2x2x1
jax: 0.10.0
libtpu: 0.0.40
codegen_flags: <defaults>
</compile_context>

<pallas_src>
import functools

import jax
import jax.numpy as jnp
from jax import lax
from jax.experimental import pallas as pl
from jax.experimental.pallas import tpu as pltpu

WEIGHT = 0.0025                      # matches CompressionLoss(weight=0.0025)
LOG2E = 1.4426950408889634           # log2(e)

NUM_CORES = 2                        # leading "parallel" axis; serial on 1-TC chips
R_MAX_ROWS = 2048                    # recon rows/block -> 2048*128*4 B = 1 MiB f32
S_MAX_BYTES = 1 << 20                # symbol block cap (~1 MiB f32 per step)


def _cdiv(a, b):
    return -(-a // b)


def _round_up(x, m):
    return _cdiv(x, m) * m


def _sum2(x):
    # Reduce the last two axes to size 1 (two single-axis reduces: safe lowering).
    return jnp.sum(jnp.sum(x, axis=-1, keepdims=True), axis=-2, keepdims=True)


def _max2(x):
    return jnp.max(jnp.max(x, axis=-1, keepdims=True), axis=-2, keepdims=True)


def _loss_kernel(xr_ref, xg_ref, s_ref,                       # inputs  (VMEM tiles)
                 mse_ref, m_ref, d_ref, w_ref,                # outputs (per-core partials)
                 mse_acc, m_acc, d_acc, w_acc,                # scratch (VMEM)
                 *, steps_per_core, n_blocks_r, n_blocks_s,
                 s_blk_rows, n_sym_true, ragged_s):
    c = pl.program_id(0)                    # core slot ("parallel")
    k = pl.program_id(1)                    # step within this core ("arbitrary")
    blk = c * steps_per_core + k            # global block index handled this step

    @pl.when(k == 0)
    def _init():
        mse_acc[...] = jnp.zeros_like(mse_acc)
        m_acc[...] = jnp.full_like(m_acc, -jnp.inf)
        d_acc[...] = jnp.zeros_like(d_acc)
        w_acc[...] = jnp.zeros_like(w_acc)

    # ---------------- reconstruction MSE partial ------------------------------
    # Wrapper zero-pads both streams identically, so no in-kernel mask is needed.
    @pl.when(blk < n_blocks_r)
    def _recon():
        xr = xr_ref[...].astype(jnp.float32)          # (R_BLK, 128)
        xg = xg_ref[...].astype(jnp.float32)
        diff = xr - xg
        # Per-tile cross-lane reduce (XLU) into a (1,1) accumulator: no full-width
        # scratch read-modify-write per step.
        mse_acc[...] += _sum2(diff * diff)

    # ---------------- entropy: per-batch-row online softmax stats -------------
    @pl.when(blk < n_blocks_s)
    def _entropy():
        s = s_ref[...].astype(jnp.float32)            # (b, S_BLK, 128)
        if ragged_s:
            # Padded tail (wrapper zero-pads) must not enter the softmax stats.
            row = lax.broadcasted_iota(jnp.int32, s.shape, 1)
            lane = lax.broadcasted_iota(jnp.int32, s.shape, 2)
            idx = blk * (s_blk_rows * 128) + row * 128 + lane
            mask = idx < n_sym_true
            s_for_max = jnp.where(mask, s, -jnp.inf)
        else:
            s_for_max = s
        # Invariant: every in-range block (blk < n_blocks_s) contains at least one
        # valid element per batch row, so tile_max is finite and exp(m_old - m_new)
        # never sees (-inf) - (-inf).  Cores with no symbol work are gated off and
        # export m = -inf, d = w = 0, which the wrapper merge maps to zero weight.
        tile_max = _max2(s_for_max)                   # (b, 1, 1)
        m_old = m_acc[...]
        m_new = jnp.maximum(m_old, tile_max)
        alpha = jnp.exp(m_old - m_new)                # first real block: exp(-inf)=0
        e = jnp.exp(s - m_new)                        # single EUP exp per element
        if ragged_s:
            e = jnp.where(mask, e, 0.0)
        # Padded s is exactly 0 (wrapper pad), so e*(s*s) is 0 there: no extra select.
        w_t = e * (s * s)
        d_acc[...] = d_acc[...] * alpha + _sum2(e)
        w_acc[...] = w_acc[...] * alpha + _sum2(w_t)
        m_acc[...] = m_new

    # ---------------- export this core's partials -----------------------------
    @pl.when(k == steps_per_core - 1)
    def _finalize():
        mse_ref[...] = mse_acc[...]
        m_ref[...] = m_acc[...]
        d_ref[...] = d_acc[...]
        w_ref[...] = w_acc[...]


def compression_loss(x_recon, x_gt, symbols, weight=WEIGHT, *,
                     max_block_rows_r=R_MAX_ROWS, max_block_bytes_s=S_MAX_BYTES):
    assert x_recon.shape == x_gt.shape
    b = symbols.shape[0]
    assert x_recon.shape[0] == b

    # ----- reconstruction stream: no per-row structure -> fully flatten -------
    n_recon = 1
    for d in x_recon.shape:
        n_recon *= d
    xr_flat = jnp.reshape(x_recon, (-1,))
    xg_flat = jnp.reshape(x_gt, (-1,))

    rows_r = _cdiv(n_recon, 128)
    if rows_r <= max_block_rows_r:
        r_blk = rows_r                       # single full-dim block (always legal)
        n_blocks_r = 1
    else:
        r_blk = max(8, (max_block_rows_r // 8) * 8)
        n_blocks_r = _cdiv(rows_r, r_blk)
    rows_r_pad = n_blocks_r * r_blk
    t_pad = rows_r_pad * 128
    if t_pad != n_recon:
        # Zero-pad BOTH streams: diff == 0 on the pad, so no in-kernel mask needed.
        # TODO(synk): tail-mask in-kernel instead to avoid this copy on ragged shapes.
        pad = t_pad - n_recon
        xr_flat = jnp.pad(xr_flat, (0, pad))
        xg_flat = jnp.pad(xg_flat, (0, pad))
    xr2 = jnp.reshape(xr_flat, (rows_r_pad, 128))
    xg2 = jnp.reshape(xg_flat, (rows_r_pad, 128))

    # ----- symbol stream: per-batch-row softmax -> keep batch, dense lanes ----
    s2 = jnp.reshape(symbols, (b, -1))
    n_sym_row = s2.shape[1]
    rows_s = _cdiv(n_sym_row, 128)
    s_cap_rows = max(8, (max_block_bytes_s // (b * 128 * 4)) // 8 * 8)
    if rows_s <= s_cap_rows:
        s_blk = rows_s                       # single full-dim block
        n_blocks_s = 1
    else:
        # Size the symbol block so its block count roughly matches the recon's.
        s_blk = min(_round_up(_cdiv(rows_s, n_blocks_r), 8), s_cap_rows)
        n_blocks_s = _cdiv(rows_s, s_blk)
    rows_s_pad = n_blocks_s * s_blk
    ns_pad = rows_s_pad * 128
    ragged_s = ns_pad != n_sym_row
    if ragged_s:
        s2 = jnp.pad(s2, ((0, 0), (0, ns_pad - n_sym_row)))   # zeros; masked in kernel
    s3 = jnp.reshape(s2, (b, rows_s_pad, 128))

    # ----- grid: (cores, steps); blocks split contiguously across cores -------
    total_blocks = max(n_blocks_r, n_blocks_s)
    steps_per_core = _cdiv(total_blocks, NUM_CORES)

    def r_map(c, k):
        return (jnp.minimum(c * steps_per_core + k, n_blocks_r - 1), 0)

    def s_map(c, k):
        return (0, jnp.minimum(c * steps_per_core + k, n_blocks_s - 1), 0)

    kernel = functools.partial(
        _loss_kernel,
        steps_per_core=steps_per_core,
        n_blocks_r=n_blocks_r, n_blocks_s=n_blocks_s,
        s_blk_rows=s_blk, n_sym_true=n_sym_row, ragged_s=ragged_s)

    out_shape = (
        jax.ShapeDtypeStruct((NUM_CORES, 1, 1), jnp.float32),       # mse partial sum
        jax.ShapeDtypeStruct((NUM_CORES, b, 1, 1), jnp.float32),    # running max m
        jax.ShapeDtypeStruct((NUM_CORES, b, 1, 1), jnp.float32),    # denominator d
        jax.ShapeDtypeStruct((NUM_CORES, b, 1, 1), jnp.float32),    # weighted sum w
    )
    out_specs = (
        pl.BlockSpec((None, 1, 1), lambda c, k: (c, 0, 0)),
        pl.BlockSpec((None, b, 1, 1), lambda c, k: (c, 0, 0, 0)),
        pl.BlockSpec((None, b, 1, 1), lambda c, k: (c, 0, 0, 0)),
        pl.BlockSpec((None, b, 1, 1), lambda c, k: (c, 0, 0, 0)),
    )

    mse_p, m_p, d_p, w_p = pl.pallas_call(
        kernel,
        out_shape=out_shape,
        grid_spec=pltpu.PrefetchScalarGridSpec(
            num_scalar_prefetch=0,
            grid=(NUM_CORES, steps_per_core),
            in_specs=[
                pl.BlockSpec((r_blk, 128), r_map),
                pl.BlockSpec((r_blk, 128), r_map),
                pl.BlockSpec((b, s_blk, 128), s_map),
            ],
            out_specs=out_specs,
            scratch_shapes=[
                pltpu.VMEM((1, 1), jnp.float32),        # mse_acc
                pltpu.VMEM((b, 1, 1), jnp.float32),     # m_acc
                pltpu.VMEM((b, 1, 1), jnp.float32),     # d_acc
                pltpu.VMEM((b, 1, 1), jnp.float32),     # w_acc
            ],
        ),
        compiler_params=pltpu.CompilerParams(
            dimension_semantics=("parallel", "arbitrary"),
            # Double-buffered input blocks + scratch stay well under 16 MiB by
            # construction (caps above), so 32 MiB is safe on v5e/v6e/v7x alike.
            vmem_limit_bytes=32 * 1024 * 1024,
        ),
    )(xr2, xg2, s3)

    # ----- wrapper merge of the per-core partials (exact math, tiny arrays) ---
    recon = jnp.sum(mse_p) / n_recon

    m_c = m_p[:, :, 0, 0]                                # (NC, b)
    d_c = d_p[:, :, 0, 0]
    w_c = w_p[:, :, 0, 0]
    m_row = jnp.max(m_c, axis=0)                         # (b,), finite (core 0 owns blk 0)
    scale = jnp.exp(m_c - m_row[None, :])                # cores w/o symbol work -> exp(-inf)=0
    d_row = jnp.sum(d_c * scale, axis=0)                 # (b,)
    w_row = jnp.sum(w_c * scale, axis=0)                 # (b,)
    n_sym = b * n_sym_row
    # entropy = mean(-p_hat * log2(exp(-s^2/2))) = 0.5*log2(e)/n * sum_b w_b/d_b
    ent = jnp.sum(w_row / d_row) * (0.5 * LOG2E / n_sym)
    full = recon + weight * ent
    # Device scalars (jittable). Callers wanting torch .item() parity can float() them.
    return full, recon, ent


def _reference(x_recon, x_gt, symbols, weight=WEIGHT):
    xr = x_recon.astype(jnp.float32)
    xg = x_gt.astype(jnp.float32)
    recon = jnp.mean((xr - xg) ** 2)
    b = symbols.shape[0]
    s = symbols.reshape(b, -1).astype(jnp.float32)
    prob = jnp.exp(-0.5 * s * s)
    p_hat = jax.nn.softmax(s, axis=-1)
    ent = jnp.mean(-p_hat * jnp.log2(prob))
    return recon + weight * ent, recon, ent


def _check(name, got, want, rtol=2e-3, atol=1e-6):
    got = float(got)
    want = float(want)
    assert abs(got - want) <= atol + rtol * abs(want), (name, got, want)


if __name__ == "__main__":
    loss_fn = jax.jit(
        compression_loss,
        static_argnames=("max_block_rows_r", "max_block_bytes_s"))

    # --- case 1: nice shapes (single dense block per stream) ------------------
    k1, k2, k3 = jax.random.split(jax.random.PRNGKey(0), 3)
    x_recon = jax.random.normal(k1, (2, 4, 16, 16), dtype=jnp.float32)
    x_gt = jax.random.normal(k2, (2, 4, 16, 16), dtype=jnp.float32)
    symbols = jax.random.normal(k3, (2, 4, 8, 8), dtype=jnp.float32)

    full_loss, recon_loss, entropy_loss = loss_fn(x_recon, x_gt, symbols)
    jax.block_until_ready(full_loss)
    rf, rr, re = _reference(x_recon, x_gt, symbols)
    _check("full_1", full_loss, rf)
    _check("recon_1", recon_loss, rr)
    _check("entropy_1", entropy_loss, re)

    # --- case 2: ragged shapes (wrapper zero-pad + in-kernel symbol mask) -----
    k4, k5, k6 = jax.random.split(jax.random.PRNGKey(0), 3)
    x_recon2 = jax.random.normal(k4, (2, 3, 17, 19), dtype=jnp.float32)
    x_gt2 = jax.random.normal(k5, (2, 3, 17, 19), dtype=jnp.float32)
    symbols2 = jax.random.normal(k6, (2, 3, 14, 15), dtype=jnp.float32)

    full2, recon2, ent2 = loss_fn(x_recon2, x_gt2, symbols2)
    jax.block_until_ready(full2)
    rf2, rr2, re2 = _reference(x_recon2, x_gt2, symbols2)
    _check("full_2", full2, rf2)
    _check("recon_2", recon2, rr2)
    _check("entropy_2", ent2, re2)

    # --- case 3: small caps to force multi-block streams, the two-core split,
    #     in-kernel online-softmax rescale, and the gated (empty-core) path ----
    k7, k8, k9 = jax.random.split(jax.random.PRNGKey(1), 3)
    x_recon3 = jax.random.normal(k7, (2, 4, 16, 32), dtype=jnp.float32)
    x_gt3 = jax.random.normal(k8, (2, 4, 16, 32), dtype=jnp.float32)
    symbols3 = jax.random.normal(k9, (2, 4, 16, 32), dtype=jnp.float32)

    full3, recon3, ent3 = loss_fn(x_recon3, x_gt3, symbols3,
                                  max_block_rows_r=8, max_block_bytes_s=8 * 1024)
    jax.block_until_ready(full3)
    rf3, rr3, re3 = _reference(x_recon3, x_gt3, symbols3)
    _check("full_3", full3, rf3)
    _check("recon_3", recon3, rr3)
    _check("entropy_3", ent3, re3)

    print("KERNEL_OK")
</pallas_src>

<mosaic_0001>
module attributes {stable_mosaic.version = 11 : i64} {
  func.func @_loss_kernel(%arg0: i32, %arg1: i32, %arg2: memref<16x128xf32, #tpu.memory_space<vmem>>, %arg3: memref<16x128xf32, #tpu.memory_space<vmem>>, %arg4: memref<2x2x128xf32, #tpu.memory_space<vmem>>, %arg5: memref<1x1x1xf32, #tpu.memory_space<vmem>>, %arg6: memref<1x2x1x1xf32, #tpu.memory_space<vmem>>, %arg7: memref<1x2x1x1xf32, #tpu.memory_space<vmem>>, %arg8: memref<1x2x1x1xf32, #tpu.memory_space<vmem>>, %arg9: memref<1x1xf32, #tpu.memory_space<vmem>>, %arg10: memref<2x1x1xf32, #tpu.memory_space<vmem>>, %arg11: memref<2x1x1xf32, #tpu.memory_space<vmem>>, %arg12: memref<2x1x1xf32, #tpu.memory_space<vmem>>) attributes {dimension_semantics = [#tpu.dimension_semantics<parallel>, #tpu.dimension_semantics<arbitrary>], iteration_bounds = array<i64: 2, 1>, scalar_prefetch = 0 : i64, scratch_operands = 4 : i64, tpu.core_type = #tpu.core_type<tc>, window_params = [{transform_indices = @transform_0, window_bounds = array<i64: 16, 128>}, {transform_indices = @transform_1, window_bounds = array<i64: 16, 128>}, {transform_indices = @transform_2, window_bounds = array<i64: 2, 2, 128>}, {transform_indices = @transform_3, window_bounds = array<i64: 1, 1, 1>}, {transform_indices = @transform_4, window_bounds = array<i64: 1, 2, 1, 1>}, {transform_indices = @transform_5, window_bounds = array<i64: 1, 2, 1, 1>}, {transform_indices = @transform_6, window_bounds = array<i64: 1, 2, 1, 1>}]} {
    %c1_i32 = arith.constant 1 : i32
    %0 = arith.muli %arg0, %c1_i32 : i32
    %1 = arith.addi %0, %arg1 : i32
    %c0_i32 = arith.constant 0 : i32
    %2 = arith.cmpi eq, %arg1, %c0_i32 : i32
    %3 = arith.extui %2 : i1 to i32
    %c0_i32_0 = arith.constant 0 : i32
    %4 = arith.cmpi ne, %3, %c0_i32_0 : i32
    scf.if %4 {
      %cst = arith.constant 0.000000e+00 : f32
      %14 = vector.broadcast %cst : f32 to vector<1x1xf32>
      %c0 = arith.constant 0 : index
      %c0_7 = arith.constant 0 : index
      %15 = vector.load %arg9[%c0, %c0_7] : memref<1x1xf32, #tpu.memory_space<vmem>>, vector<1x1xf32>
      tpu.vector_store %arg9[%c0, %c0_7], %14 {strides = array<i32>} : memref<1x1xf32, #tpu.memory_space<vmem>>, vector<1x1xf32>,
      %cst_8 = arith.constant 0xFF800000 : f32
      %16 = vector.broadcast %cst_8 : f32 to vector<2x1x1xf32>
      %c0_9 = arith.constant 0 : index
      %c0_10 = arith.constant 0 : index
      %c0_11 = arith.constant 0 : index
      %17 = vector.load %arg10[%c0_9, %c0_10, %c0_11] : memref<2x1x1xf32, #tpu.memory_space<vmem>>, vector<2x1x1xf32>
      tpu.vector_store %arg10[%c0_9, %c0_10, %c0_11], %16 {strides = array<i32>} : memref<2x1x1xf32, #tpu.memory_space<vmem>>, vector<2x1x1xf32>,
      %cst_12 = arith.constant 0.000000e+00 : f32
      %18 = vector.broadcast %cst_12 : f32 to vector<2x1x1xf32>
      %c0_13 = arith.constant 0 : index
      %c0_14 = arith.constant 0 : index
      %c0_15 = arith.constant 0 : index
      %19 = vector.load %arg11[%c0_13, %c0_14, %c0_15] : memref<2x1x1xf32, #tpu.memory_space<vmem>>, vector<2x1x1xf32>
      tpu.vector_store %arg11[%c0_13, %c0_14, %c0_15], %18 {strides = array<i32>} : memref<2x1x1xf32, #tpu.memory_space<vmem>>, vector<2x1x1xf32>,
      %cst_16 = arith.constant 0.000000e+00 : f32
      %20 = vector.broadcast %cst_16 : f32 to vector<2x1x1xf32>
      %c0_17 = arith.constant 0 : index
      %c0_18 = arith.constant 0 : index
      %c0_19 = arith.constant 0 : index
      %21 = vector.load %arg12[%c0_17, %c0_18, %c0_19] : memref<2x1x1xf32, #tpu.memory_space<vmem>>, vector<2x1x1xf32>
      tpu.vector_store %arg12[%c0_17, %c0_18, %c0_19], %20 {strides = array<i32>} : memref<2x1x1xf32, #tpu.memory_space<vmem>>, vector<2x1x1xf32>,
    } else {
    }
    %c1_i32_1 = arith.constant 1 : i32
    %5 = arith.cmpi slt, %1, %c1_i32_1 : i32
    %6 = arith.extui %5 : i1 to i32
    %c0_i32_2 = arith.constant 0 : i32
    %7 = arith.cmpi ne, %6, %c0_i32_2 : i32
    scf.if %7 {
      %c0 = arith.constant 0 : index
      %c0_7 = arith.constant 0 : index
      %14 = vector.load %arg2[%c0, %c0_7] : memref<16x128xf32, #tpu.memory_space<vmem>>, vector<16x128xf32>
      %c0_8 = arith.constant 0 : index
      %c0_9 = arith.constant 0 : index
      %15 = vector.load %arg3[%c0_8, %c0_9] : memref<16x128xf32, #tpu.memory_space<vmem>>, vector<16x128xf32>
      %16 = arith.subf %14, %15 : vector<16x128xf32>
      %c0_10 = arith.constant 0 : index
      %c0_11 = arith.constant 0 : index
      %17 = vector.load %arg9[%c0_10, %c0_11] : memref<1x1xf32, #tpu.memory_space<vmem>>, vector<1x1xf32>
      %18 = arith.mulf %16, %16 : vector<16x128xf32>
      %cst = arith.constant dense<0.000000e+00> : vector<16xf32>
      %19 = vector.multi_reduction <add>, %18, %cst [1] : vector<16x128xf32> to vector<16xf32>
      %20 = vector.shape_cast %19 : vector<16xf32> to vector<16x1xf32>
      %cst_12 = arith.constant dense<0.000000e+00> : vector<1xf32>
      %21 = vector.multi_reduction <add>, %20, %cst_12 [0] : vector<16x1xf32> to vector<1xf32>
      %22 = vector.shape_cast %21 : vector<1xf32> to vector<1x1xf32>
      %23 = arith.addf %17, %22 : vector<1x1xf32>
      %c0_13 = arith.constant 0 : index
      %c0_14 = arith.constant 0 : index
      %24 = vector.load %arg9[%c0_13, %c0_14] : memref<1x1xf32, #tpu.memory_space<vmem>>, vector<1x1xf32>
      tpu.vector_store %arg9[%c0_13, %c0_14], %23 {strides = array<i32>} : memref<1x1xf32, #tpu.memory_space<vmem>>, vector<1x1xf32>,
    } else {
    }
    %c1_i32_3 = arith.constant 1 : i32
    %8 = arith.cmpi slt, %1, %c1_i32_3 : i32
    %9 = arith.extui %8 : i1 to i32
    %c0_i32_4 = arith.constant 0 : i32
    %10 = arith.cmpi ne, %9, %c0_i32_4 : i32
    scf.if %10 {
      %c0 = arith.constant 0 : index
      %c0_7 = arith.constant 0 : index
      %c0_8 = arith.constant 0 : index
      %14 = vector.load %arg4[%c0, %c0_7, %c0_8] : memref<2x2x128xf32, #tpu.memory_space<vmem>>, vector<2x2x128xf32>
      %cst = arith.constant dense<0xFF800000> : vector<2x2xf32>
      %15 = vector.multi_reduction <maximumf>, %14, %cst [2] : vector<2x2x128xf32> to vector<2x2xf32>
      %16 = vector.shape_cast %15 : vector<2x2xf32> to vector<2x2x1xf32>
      %cst_9 = arith.constant dense<0xFF800000> : vector<2x1xf32>
      %17 = vector.multi_reduction <maximumf>, %16, %cst_9 [1] : vector<2x2x1xf32> to vector<2x1xf32>
      %18 = vector.shape_cast %17 : vector<2x1xf32> to vector<2x1x1xf32>
      %c0_10 = arith.constant 0 : index
      %c0_11 = arith.constant 0 : index
      %c0_12 = arith.constant 0 : index
      %19 = vector.load %arg10[%c0_10, %c0_11, %c0_12] : memref<2x1x1xf32, #tpu.memory_space<vmem>>, vector<2x1x1xf32>
      %20 = arith.maximumf %19, %18 : vector<2x1x1xf32>
      %21 = arith.subf %19, %20 : vector<2x1x1xf32>
      %22 = math.exp %21 : vector<2x1x1xf32>
      %23 = vector.broadcast %20 : vector<2x1x1xf32> to vector<2x2x128xf32>
      %24 = arith.subf %14, %23 : vector<2x2x128xf32>
      %25 = math.exp %24 : vector<2x2x128xf32>
      %26 = arith.mulf %14, %14 : vector<2x2x128xf32>
      %27 = arith.mulf %25, %26 : vector<2x2x128xf32>
      %c0_13 = arith.constant 0 : index
      %c0_14 = arith.constant 0 : index
      %c0_15 = arith.constant 0 : index
      %28 = vector.load %arg11[%c0_13, %c0_14, %c0_15] : memref<2x1x1xf32, #tpu.memory_space<vmem>>, vector<2x1x1xf32>
      %29 = arith.mulf %28, %22 : vector<2x1x1xf32>
      %cst_16 = arith.constant dense<0.000000e+00> : vector<2x2xf32>
      %30 = vector.multi_reduction <add>, %25, %cst_16 [2] : vector<2x2x128xf32> to vector<2x2xf32>
      %31 = vector.shape_cast %30 : vector<2x2xf32> to vector<2x2x1xf32>
      %cst_17 = arith.constant dense<0.000000e+00> : vector<2x1xf32>
      %32 = vector.multi_reduction <add>, %31, %cst_17 [1] : vector<2x2x1xf32> to vector<2x1xf32>
      %33 = vector.shape_cast %32 : vector<2x1xf32> to vector<2x1x1xf32>
      %34 = arith.addf %29, %33 : vector<2x1x1xf32>
      %c0_18 = arith.constant 0 : index
      %c0_19 = arith.constant 0 : index
      %c0_20 = arith.constant 0 : index
      %35 = vector.load %arg11[%c0_18, %c0_19, %c0_20] : memref<2x1x1xf32, #tpu.memory_space<vmem>>, vector<2x1x1xf32>
      tpu.vector_store %arg11[%c0_18, %c0_19, %c0_20], %34 {strides = array<i32>} : memref<2x1x1xf32, #tpu.memory_space<vmem>>, vector<2x1x1xf32>,
      %c0_21 = arith.constant 0 : index
      %c0_22 = arith.constant 0 : index
      %c0_23 = arith.constant 0 : index
      %36 = vector.load %arg12[%c0_21, %c0_22, %c0_23] : memref<2x1x1xf32, #tpu.memory_space<vmem>>, vector<2x1x1xf32>
      %37 = arith.mulf %36, %22 : vector<2x1x1xf32>
      %cst_24 = arith.constant dense<0.000000e+00> : vector<2x2xf32>
      %38 = vector.multi_reduction <add>, %27, %cst_24 [2] : vector<2x2x128xf32> to vector<2x2xf32>
      %39 = vector.shape_cast %38 : vector<2x2xf32> to vector<2x2x1xf32>
      %cst_25 = arith.constant dense<0.000000e+00> : vector<2x1xf32>
      %40 = vector.multi_reduction <add>, %39, %cst_25 [1] : vector<2x2x1xf32> to vector<2x1xf32>
      %41 = vector.shape_cast %40 : vector<2x1xf32> to vector<2x1x1xf32>
      %42 = arith.addf %37, %41 : vector<2x1x1xf32>
      %c0_26 = arith.constant 0 : index
      %c0_27 = arith.constant 0 : index
      %c0_28 = arith.constant 0 : index
      %43 = vector.load %arg12[%c0_26, %c0_27, %c0_28] : memref<2x1x1xf32, #tpu.memory_space<vmem>>, vector<2x1x1xf32>
      tpu.vector_store %arg12[%c0_26, %c0_27, %c0_28], %42 {strides = array<i32>} : memref<2x1x1xf32, #tpu.memory_space<vmem>>, vector<2x1x1xf32>,
      %c0_29 = arith.constant 0 : index
      %c0_30 = arith.constant 0 : index
      %c0_31 = arith.constant 0 : index
      %44 = vector.load %arg10[%c0_29, %c0_30, %c0_31] : memref<2x1x1xf32, #tpu.memory_space<vmem>>, vector<2x1x1xf32>
      tpu.vector_store %arg10[%c0_29, %c0_30, %c0_31], %20 {strides = array<i32>} : memref<2x1x1xf32, #tpu.memory_space<vmem>>, vector<2x1x1xf32>,
    } else {
    }
    %c0_i32_5 = arith.constant 0 : i32
    %11 = arith.cmpi eq, %arg1, %c0_i32_5 : i32
    %12 = arith.extui %11 : i1 to i32
    %c0_i32_6 = arith.constant 0 : i32
    %13 = arith.cmpi ne, %12, %c0_i32_6 : i32
    scf.if %13 {
      %c0 = arith.constant 0 : index
      %c0_7 = arith.constant 0 : index
      %14 = vector.load %arg9[%c0, %c0_7] : memref<1x1xf32, #tpu.memory_space<vmem>>, vector<1x1xf32>
      %c0_8 = arith.constant 0 : index
      %c0_9 = arith.constant 0 : index
      %c0_10 = arith.constant 0 : index
      %15 = vector.load %arg5[%c0_8, %c0_9, %c0_10] : memref<1x1x1xf32, #tpu.memory_space<vmem>>, vector<1x1x1xf32>
      %16 = vector.shape_cast %15 : vector<1x1x1xf32> to vector<1x1xf32>
      %17 = vector.shape_cast %14 : vector<1x1xf32> to vector<1x1x1xf32>
      tpu.vector_store %arg5[%c0_8, %c0_9, %c0_10], %17 {strides = array<i32>} : memref<1x1x1xf32, #tpu.memory_space<vmem>>, vector<1x1x1xf32>,
      %c0_11 = arith.constant 0 : index
      %c0_12 = arith.constant 0 : index
      %c0_13 = arith.constant 0 : index
      %18 = vector.load %arg10[%c0_11, %c0_12, %c0_13] : memref<2x1x1xf32, #tpu.memory_space<vmem>>, vector<2x1x1xf32>
      %c0_14 = arith.constant 0 : index
      %c0_15 = arith.constant 0 : index
      %c0_16 = arith.constant 0 : index
      %c0_17 = arith.constant 0 : index
      %19 = vector.load %arg6[%c0_14, %c0_15, %c0_16, %c0_17] : memref<1x2x1x1xf32, #tpu.memory_space<vmem>>, vector<1x2x1x1xf32>
      %20 = vector.shape_cast %19 : vector<1x2x1x1xf32> to vector<2x1x1xf32>
      %21 = vector.shape_cast %18 : vector<2x1x1xf32> to vector<1x2x1x1xf32>
      tpu.vector_store %arg6[%c0_14, %c0_15, %c0_16, %c0_17], %21 {strides = array<i32>} : memref<1x2x1x1xf32, #tpu.memory_space<vmem>>, vector<1x2x1x1xf32>,
      %c0_18 = arith.constant 0 : index
      %c0_19 = arith.constant 0 : index
      %c0_20 = arith.constant 0 : index
      %22 = vector.load %arg11[%c0_18, %c0_19, %c0_20] : memref<2x1x1xf32, #tpu.memory_space<vmem>>, vector<2x1x1xf32>
      %c0_21 = arith.constant 0 : index
      %c0_22 = arith.constant 0 : index
      %c0_23 = arith.constant 0 : index
      %c0_24 = arith.constant 0 : index
      %23 = vector.load %arg7[%c0_21, %c0_22, %c0_23, %c0_24] : memref<1x2x1x1xf32, #tpu.memory_space<vmem>>, vector<1x2x1x1xf32>
      %24 = vector.shape_cast %23 : vector<1x2x1x1xf32> to vector<2x1x1xf32>
      %25 = vector.shape_cast %22 : vector<2x1x1xf32> to vector<1x2x1x1xf32>
      tpu.vector_store %arg7[%c0_21, %c0_22, %c0_23, %c0_24], %25 {strides = array<i32>} : memref<1x2x1x1xf32, #tpu.memory_space<vmem>>, vector<1x2x1x1xf32>,
      %c0_25 = arith.constant 0 : index
      %c0_26 = arith.constant 0 : index
      %c0_27 = arith.constant 0 : index
      %26 = vector.load %arg12[%c0_25, %c0_26, %c0_27] : memref<2x1x1xf32, #tpu.memory_space<vmem>>, vector<2x1x1xf32>
      %c0_28 = arith.constant 0 : index
      %c0_29 = arith.constant 0 : index
      %c0_30 = arith.constant 0 : index
      %c0_31 = arith.constant 0 : index
      %27 = vector.load %arg8[%c0_28, %c0_29, %c0_30, %c0_31] : memref<1x2x1x1xf32, #tpu.memory_space<vmem>>, vector<1x2x1x1xf32>
      %28 = vector.shape_cast %27 : vector<1x2x1x1xf32> to vector<2x1x1xf32>
      %29 = vector.shape_cast %26 : vector<2x1x1xf32> to vector<1x2x1x1xf32>
      tpu.vector_store %arg8[%c0_28, %c0_29, %c0_30, %c0_31], %29 {strides = array<i32>} : memref<1x2x1x1xf32, #tpu.memory_space<vmem>>, vector<1x2x1x1xf32>,
    } else {
    }
    return
  }
  func.func @transform_0(%arg0: i32, %arg1: i32) -> (i32, i32) {
    %c1_i32 = arith.constant 1 : i32
    %0 = arith.muli %arg0, %c1_i32 : i32
    %1 = arith.addi %0, %arg1 : i32
    %c0_i32 = arith.constant 0 : i32
    %2 = arith.minsi %1, %c0_i32 : i32
    %c0_i32_0 = arith.constant 0 : i32
    %c0_i32_1 = arith.constant 0 : i32
    return %2, %c0_i32_0 : i32, i32
  }
  func.func @transform_1(%arg0: i32, %arg1: i32) -> (i32, i32) {
    %c1_i32 = arith.constant 1 : i32
    %0 = arith.muli %arg0, %c1_i32 : i32
    %1 = arith.addi %0, %arg1 : i32
    %c0_i32 = arith.constant 0 : i32
    %2 = arith.minsi %1, %c0_i32 : i32
    %c0_i32_0 = arith.constant 0 : i32
    %c0_i32_1 = arith.constant 0 : i32
    return %2, %c0_i32_0 : i32, i32
  }
  func.func @transform_2(%arg0: i32, %arg1: i32) -> (i32, i32, i32) {
    %c1_i32 = arith.constant 1 : i32
    %0 = arith.muli %arg0, %c1_i32 : i32
    %1 = arith.addi %0, %arg1 : i32
    %c0_i32 = arith.constant 0 : i32
    %2 = arith.minsi %1, %c0_i32 : i32
    %c0_i32_0 = arith.constant 0 : i32
    %c0_i32_1 = arith.constant 0 : i32
    %c0_i32_2 = arith.constant 0 : i32
    return %c0_i32_0, %2, %c0_i32_1 : i32, i32, i32
  }
  func.func @transform_3(%arg0: i32, %arg1: i32) -> (i32, i32, i32) {
    %c0_i32 = arith.constant 0 : i32
    %c0_i32_0 = arith.constant 0 : i32
    %c0_i32_1 = arith.constant 0 : i32
    return %arg0, %c0_i32, %c0_i32_0 : i32, i32, i32
  }
  func.func @transform_4(%arg0: i32, %arg1: i32) -> (i32, i32, i32, i32) {
    %c0_i32 = arith.constant 0 : i32
    %c0_i32_0 = arith.constant 0 : i32
    %c0_i32_1 = arith.constant 0 : i32
    %c0_i32_2 = arith.constant 0 : i32
    return %arg0, %c0_i32, %c0_i32_0, %c0_i32_1 : i32, i32, i32, i32
  }
  func.func @transform_5(%arg0: i32, %arg1: i32) -> (i32, i32, i32, i32) {
    %c0_i32 = arith.constant 0 : i32
    %c0_i32_0 = arith.constant 0 : i32
    %c0_i32_1 = arith.constant 0 : i32
    %c0_i32_2 = arith.constant 0 : i32
    return %arg0, %c0_i32, %c0_i32_0, %c0_i32_1 : i32, i32, i32, i32
  }
  func.func @transform_6(%arg0: i32, %arg1: i32) -> (i32, i32, i32, i32) {
    %c0_i32 = arith.constant 0 : i32
    %c0_i32_0 = arith.constant 0 : i32
    %c0_i32_1 = arith.constant 0 : i32
    %c0_i32_2 = arith.constant 0 : i32
    return %arg0, %c0_i32, %c0_i32_0, %c0_i32_1 : i32, i32, i32, i32
  }
}

</mosaic_0001>

<llo_original>
// kernel: compression_loss.1
$region0: #{compression_loss.1}
  #allocation0 [shape = 'u32[]', space=smem, size = 0x4, offset = 0x4, fixed_abs, tag = 'smem constant byte address 0x4 - core index']
  #allocation1 [shape = 'u32[144,128]{1,0:T(1,128)}', space=vmem, size = 0x12000, scoped, tag = 'internal scratch']
  #allocation2 [shape = 'f32[1,1]{1,0:T(1,128)}', space=vmem, size = 0x200, scoped, tag = 'scratch operand']
  #allocation3 [shape = 'f32[2,1,1]{2,1,0:T(1,128)}', space=vmem, size = 0x400, scoped, tag = 'scratch operand']
  #allocation4 [shape = 'f32[2,1,1]{2,1,0:T(1,128)}', space=vmem, size = 0x400, scoped, tag = 'scratch operand']
  #allocation5 [shape = 'f32[2,1,1]{2,1,0:T(1,128)}', space=vmem, size = 0x400, scoped, tag = 'scratch operand']
  %s0 = inlined_call_operand.vmem [shape: f32[16,128], index: 0, kind: input, shape index: {}]
  %s1 = inlined_call_operand.vmem [shape: f32[16,128], index: 1, kind: input, shape index: {}]
  %s2 = inlined_call_operand.vmem [shape: f32[2,2,128], index: 2, kind: input, shape index: {}]
  %s3 = inlined_call_operand.vmem [shape: f32[2,1,1], index: 3, kind: output, shape index: {0}]
  %s4 = inlined_call_operand.vmem [shape: f32[2,2,1,1], index: 4, kind: output, shape index: {1}]
  %s5 = inlined_call_operand.vmem [shape: f32[2,2,1,1], index: 5, kind: output, shape index: {2}]
  %s6 = inlined_call_operand.vmem [shape: f32[2,2,1,1], index: 6, kind: output, shape index: {3}]
  %7 = xla_tuple %s3, %s4, %s5, %s6
  %s8 = sld [smem:[#allocation0]]
  $region81: #{compression_loss.1} parent=0
    _
  %s10 = ssub.s32 1, %s8
  %s11 = scalar_select 0, %s10, %s8
  loop: start=0, step=1, limit=4
  $region2: #{compression_loss.1} parent=0 // loop_pre_header
    _
  $region3: #{compression_loss.1} parent=0 // loop_header
    %s13 = sphi 0, %s17
    %p14 = scmp.ge.s32.totalorder %s13, 4
    %s20 = sphi 0, %s32
    %s21 = sphi 0, %s28
    %s22 = sphi 0, %s20
    %s23 = sphi 0, %s21
    %s24 = sphi 0, %s22
    %s25 = sphi 0, %s23
    %s41 = sphi 0, %s43
    %s44 = sphi 0, %s41
    %s45 = sphi 0, %s44
    %s61 = sphi 0, %s45
    %s73 = sphi 0, %s75
    %s76 = sphi 0, %s73
    %s77 = sphi 0, %s76
    %s93 = sphi 0, %s77
    %s105 = sphi 0, %s107
    %s108 = sphi 0, %s105
    %s109 = sphi 0, %s108
    %s125 = sphi 0, %s109
    %s131 = sphi 0, %s133
    %s134 = sphi 0, %s131
    %s135 = sphi 0, %s134
    %s151 = sphi 0, %s135
    %s157 = sphi 0, %s159
    %s160 = sphi 0, %s157
    %s161 = sphi 0, %s160
    %s177 = sphi 0, %s161
    %s183 = sphi 0, %s185
    %s186 = sphi 0, %s183
    %s187 = sphi 0, %s186
    %s203 = sphi 0, %s187
    %s209 = sphi 0, %s211
    %s212 = sphi 0, %s209
    %s213 = sphi 0, %s212
    %s229 = sphi 0, %s213
  $region4: #{compression_loss.1} parent=0 // loop_header_branch
    %16 = sbr.rel (%p14) target = $region8
  $region5: #{compression_loss.1} parent=0 // loop_body
    %s18 = ssub.s32 %s13, 1
    %s19 = ssub.s32 %s13, 2
    %s26 = sadd.s32 1, %s21
    %p27 = scmp.ge.s32.totalorder %s26, 1
    %s28 = scalar_select %p27, 0, %s26
    %s29 = sadd.s32 1, %s20
    %s30 = scalar_select %p27, %s29, %s20
    %p31 = scmp.ge.s32.totalorder %s30, 2
    %s32 = scalar_select %p31, 0, %s30
    %s33 = sadd.s32 %s20, %s21
    %p34 = scmp.lt.s32.totalorder %s33, 0
    %s35 = scalar_select %p34, %s33, 0
    %s36 = sadd.s32 %s32, %s28
    %p37 = scmp.lt.s32.totalorder %s36, 0
    %s38 = scalar_select %p37, %s36, 0
    %s39 = ssub.s32 %s35, %s38
    %p40 = scmp.eq.s32.totalorder %s39, 0
    %s42 = sadd.s32 %s41, 1
    %s43 = scalar_select %p40, %s41, %s42
    %p46 = pneg %p40
    %p47 = scmp.eq.s32.totalorder %s13, 1
    %p48 = por %p46, %p47
    %p49 = scmp.ne.s32.totalorder %s41, %s44
    %p50 = scmp.eq.s32.totalorder %s13, 0
    %p51 = por %p49, %p50
    %p52 = scmp.ne.s32.totalorder %s41, %s44
    %p53 = scmp.eq.s32.totalorder %s18, 1
    %p54 = por %p52, %p53
    %p55 = scmp.ne.s32.totalorder %s44, %s45
    %p56 = scmp.eq.s32.totalorder %s18, 0
    %p57 = por %p55, %p56
    %p58 = scmp.ne.s32.totalorder %s44, %s45
    %p59 = scmp.eq.s32.totalorder %s19, 1
    %p60 = por %p58, %p59
    %p62 = scmp.ne.s32.totalorder %s45, %s61
    %p63 = scmp.eq.s32.totalorder %s19, 0
    %p64 = por %p62, %p63
    %s65 = sadd.s32 %s20, %s21
    %p66 = scmp.lt.s32.totalorder %s65, 0
    %s67 = scalar_select %p66, %s65, 0
    %s68 = sadd.s32 %s32, %s28
    %p69 = scmp.lt.s32.totalorder %s68, 0
    %s70 = scalar_select %p69, %s68, 0
    %s71 = ssub.s32 %s67, %s70
    %p72 = scmp.eq.s32.totalorder %s71, 0
    %s74 = sadd.s32 %s73, 1
    %s75 = scalar_select %p72, %s73, %s74
    %p78 = pneg %p72
    %p79 = scmp.eq.s32.totalorder %s13, 1
    %p80 = por %p78, %p79
    %p81 = scmp.ne.s32.totalorder %s73, %s76
    %p82 = scmp.eq.s32.totalorder %s13, 0
    %p83 = por %p81, %p82
    %p84 = scmp.ne.s32.totalorder %s73, %s76
    %p85 = scmp.eq.s32.totalorder %s18, 1
    %p86 = por %p84, %p85
    %p87 = scmp.ne.s32.totalorder %s76, %s77
    %p88 = scmp.eq.s32.totalorder %s18, 0
    %p89 = por %p87, %p88
    %p90 = scmp.ne.s32.totalorder %s76, %s77
    %p91 = scmp.eq.s32.totalorder %s19, 1
    %p92 = por %p90, %p91
    %p94 = scmp.ne.s32.totalorder %s77, %s93
    %p95 = scmp.eq.s32.totalorder %s19, 0
    %p96 = por %p94, %p95
    %s97 = sadd.s32 %s20, %s21
    %p98 = scmp.lt.s32.totalorder %s97, 0
    %s99 = scalar_select %p98, %s97, 0
    %s100 = sadd.s32 %s32, %s28
    %p101 = scmp.lt.s32.totalorder %s100, 0
    %s102 = scalar_select %p101, %s100, 0
    %s103 = ssub.s32 %s99, %s102
    %p104 = scmp.eq.s32.totalorder %s103, 0
    %s106 = sadd.s32 %s105, 1
    %s107 = scalar_select %p104, %s105, %s106
    %p110 = pneg %p104
    %p111 = scmp.eq.s32.totalorder %s13, 1
    %p112 = por %p110, %p111
    %p113 = scmp.ne.s32.totalorder %s105, %s108
    %p114 = scmp.eq.s32.totalorder %s13, 0
    %p115 = por %p113, %p114
    %p116 = scmp.ne.s32.totalorder %s105, %s108
    %p117 = scmp.eq.s32.totalorder %s18, 1
    %p118 = por %p116, %p117
    %p119 = scmp.ne.s32.totalorder %s108, %s109
    %p120 = scmp.eq.s32.totalorder %s18, 0
    %p121 = por %p119, %p120
    %p122 = scmp.ne.s32.totalorder %s108, %s109
    %p123 = scmp.eq.s32.totalorder %s19, 1
    %p124 = por %p122, %p123
    %p126 = scmp.ne.s32.totalorder %s109, %s125
    %p127 = scmp.eq.s32.totalorder %s19, 0
    %p128 = por %p126, %p127
    %s129 = ssub.s32 %s20, %s32
    %p130 = scmp.eq.s32.totalorder %s129, 0
    %s132 = sadd.s32 %s131, 1
    %s133 = scalar_select %p130, %s131, %s132
    %p136 = pneg %p130
    %p137 = scmp.eq.s32.totalorder %s13, 1
    %p138 = por %p136, %p137
    %p139 = scmp.ne.s32.totalorder %s131, %s134
    %p140 = scmp.eq.s32.totalorder %s13, 0
    %p141 = por %p139, %p140
    %p142 = scmp.ne.s32.totalorder %s131, %s134
    %p143 = scmp.eq.s32.totalorder %s18, 1
    %p144 = por %p142, %p143
    %p145 = scmp.ne.s32.totalorder %s134, %s135
    %p146 = scmp.eq.s32.totalorder %s18, 0
    %p147 = por %p145, %p146
    %p148 = scmp.ne.s32.totalorder %s134, %s135
    %p149 = scmp.eq.s32.totalorder %s19, 1
    %p150 = por %p148, %p149
    %p152 = scmp.ne.s32.totalorder %s135, %s151
    %p153 = scmp.eq.s32.totalorder %s19, 0
    %p154 = por %p152, %p153
    %s155 = ssub.s32 %s20, %s32
    %p156 = scmp.eq.s32.totalorder %s155, 0
    %s158 = sadd.s32 %s157, 1
    %s159 = scalar_select %p156, %s157, %s158
    %p162 = pneg %p156
    %p163 = scmp.eq.s32.totalorder %s13, 1
    %p164 = por %p162, %p163
    %p165 = scmp.ne.s32.totalorder %s157, %s160
    %p166 = scmp.eq.s32.totalorder %s13, 0
    %p167 = por %p165, %p166
    %p168 = scmp.ne.s32.totalorder %s157, %s160
    %p169 = scmp.eq.s32.totalorder %s18, 1
    %p170 = por %p168, %p169
    %p171 = scmp.ne.s32.totalorder %s160, %s161
    %p172 = scmp.eq.s32.totalorder %s18, 0
    %p173 = por %p171, %p172
    %p174 = scmp.ne.s32.totalorder %s160, %s161
    %p175 = scmp.eq.s32.totalorder %s19, 1
    %p176 = por %p174, %p175
    %p178 = scmp.ne.s32.totalorder %s161, %s177
    %p179 = scmp.eq.s32.totalorder %s19, 0
    %p180 = por %p178, %p179
    %s181 = ssub.s32 %s20, %s32
    %p182 = scmp.eq.s32.totalorder %s181, 0
    %s184 = sadd.s32 %s183, 1
    %s185 = scalar_select %p182, %s183, %s184
    %p188 = pneg %p182
    %p189 = scmp.eq.s32.totalorder %s13, 1
    %p190 = por %p188, %p189
    %p191 = scmp.ne.s32.totalorder %s183, %s186
    %p192 = scmp.eq.s32.totalorder %s13, 0
    %p193 = por %p191, %p192
    %p194 = scmp.ne.s32.totalorder %s183, %s186
    %p195 = scmp.eq.s32.totalorder %s18, 1
    %p196 = por %p194, %p195
    %p197 = scmp.ne.s32.totalorder %s186, %s187
    %p198 = scmp.eq.s32.totalorder %s18, 0
    %p199 = por %p197, %p198
    %p200 = scmp.ne.s32.totalorder %s186, %s187
    %p201 = scmp.eq.s32.totalorder %s19, 1
    %p202 = por %p200, %p201
    %p204 = scmp.ne.s32.totalorder %s187, %s203
    %p205 = scmp.eq.s32.totalorder %s19, 0
    %p206 = por %p204, %p205
    %s207 = ssub.s32 %s20, %s32
    %p208 = scmp.eq.s32.totalorder %s207, 0
    %s210 = sadd.s32 %s209, 1
    %s211 = scalar_select %p208, %s209, %s210
    %p214 = pneg %p208
    %p215 = scmp.eq.s32.totalorder %s13, 1
    %p216 = por %p214, %p215
    %p217 = scmp.ne.s32.totalorder %s209, %s212
    %p218 = scmp.eq.s32.totalorder %s13, 0
    %p219 = por %p217, %p218
    %p220 = scmp.ne.s32.totalorder %s209, %s212
    %p221 = scmp.eq.s32.totalorder %s18, 1
    %p222 = por %p220, %p221
    %p223 = scmp.ne.s32.totalorder %s212, %s213
    %p224 = scmp.eq.s32.totalorder %s18, 0
    %p225 = por %p223, %p224
    %p226 = scmp.ne.s32.totalorder %s212, %s213
    %p227 = scmp.eq.s32.totalorder %s19, 1
    %p228 = por %p226, %p227
    %p230 = scmp.ne.s32.totalorder %s213, %s229
    %p231 = scmp.eq.s32.totalorder %s19, 0
    %p232 = por %p230, %p231
    %p233 = scmp.le.s32.totalorder 1, %s13
    %p234 = scmp.lt.s32.totalorder %s13, 3
    %p235 = pnand %p233, %p234
    %p236 = pneg %p235
    // Predicated region
    $region9: #{compression_loss.1} parent=5 // pred_check
      _
    $region10: #{compression_loss.1} parent=5 // pred_check_branch
      %238 = sbr.rel (%p235) target = $region12
    $region11: #{compression_loss.1} parent=5 // pred_region
      %s239 = ssub.s32 %s13, 1
    $region12: #{compression_loss.1} parent=5 // pred_fallthru
      _
    %p240 = scmp.lt.s32.totalorder %s13, 2
    // Predicated region
    $region13: #{compression_loss.1} parent=5 // pred_check
      %p241 = pneg %p240
    $region14: #{compression_loss.1} parent=5 // pred_check_branch
      %243 = sbr.rel (%p241) target = $region16
    $region15: #{compression_loss.1} parent=5 // pred_region
      // Predicated region
      $region17: #{compression_loss.1} parent=15 // pred_check
        %p244 = pneg %p51
      $region18: #{compression_loss.1} parent=15 // pred_check_branch
        %246 = sbr.rel (%p244) target = $region20
      $region19: #{compression_loss.1} parent=15 // pred_region
        %s247 = sadd.s32 %s20, %s21
        %p248 = scmp.lt.s32.totalorder %s247, 0
        %s249 = scalar_select %p248, %s247, 0
        %s250 = smul.u32 2, %s249
        %p251 = scmp.lt.s32.totalorder %s250, 1
        %s252 = scalar_select %p251, %s250, 1
        %s253 = smul.addr %s252, 8
        %s254 = scalar_lea.vmem %s0, %s253
        %s255 = sadd.s32 %s20, %s21
        %p256 = scmp.lt.s32.totalorder %s255, 0
        %s257 = scalar_select %p256, %s255, 0
        %s258 = smul.u32 2, %s257
      $region20: #{compression_loss.1} parent=15 // pred_fallthru
        _
      // Predicated region
      $region21: #{compression_loss.1} parent=15 // pred_check
        %p259 = pneg %p83
      $region22: #{compression_loss.1} parent=15 // pred_check_branch
        %261 = sbr.rel (%p259) target = $region24
      $region23: #{compression_loss.1} parent=15 // pred_region
        %s262 = sadd.s32 %s20, %s21
        %p263 = scmp.lt.s32.totalorder %s262, 0
        %s264 = scalar_select %p263, %s262, 0
        %s265 = smul.u32 2, %s264
        %p266 = scmp.lt.s32.totalorder %s265, 1
        %s267 = scalar_select %p266, %s265, 1
        %s268 = smul.addr %s267, 8
        %s269 = scalar_lea.vmem %s1, %s268
        %s270 = sadd.s32 %s20, %s21
        %p271 = scmp.lt.s32.totalorder %s270, 0
        %s272 = scalar_select %p271, %s270, 0
        %s273 = smul.u32 2, %s272
      $region24: #{compression_loss.1} parent=15 // pred_fallthru
        _
      // Predicated region
      $region25: #{compression_loss.1} parent=15 // pred_check
        %p274 = pneg %p115
      $region26: #{compression_loss.1} parent=15 // pred_check_branch
        %276 = sbr.rel (%p274) target = $region28
      $region27: #{compression_loss.1} parent=15 // pred_region
        %s277 = sadd.s32 %s20, %s21
        %p278 = scmp.lt.s32.totalorder %s277, 0
        %s279 = scalar_select %p278, %s277, 0
        %p280 = scmp.lt.s32.totalorder %s279, 0
        %s281 = scalar_select %p280, %s279, 0
        %s282 = smul.addr %s281, 2
        %s283 = scalar_lea.vmem %s2, %s282
        %s284 = sadd.s32 %s20, %s21
        %p285 = scmp.lt.s32.totalorder %s284, 0
        %s286 = scalar_select %p285, %s284, 0
      $region28: #{compression_loss.1} parent=15 // pred_fallthru
        _
    $region16: #{compression_loss.1} parent=5 // pred_fallthru
      _
    %p287 = scmp.le.s32.totalorder 1, %s13
    %p288 = scmp.lt.s32.totalorder %s13, 3
    %p289 = pnand %p287, %p288
    %p290 = pneg %p289
    // Predicated region
    $region29: #{compression_loss.1} parent=5 // pred_check
      _
    $region30: #{compression_loss.1} parent=5 // pred_check_branch
      %292 = sbr.rel (%p289) target = $region32
    $region31: #{compression_loss.1} parent=5 // pred_region
      %s293 = ssub.s32 %s13, 1
      %s294 = sadd.s32 %s22, %s23
      %p295 = scmp.lt.s32.totalorder %s294, 0
      %s296 = scalar_select %p295, %s294, 0
      %s297 = smul.u32 2, %s296
      %p298 = scmp.lt.s32.totalorder %s297, 1
      %s299 = scalar_select %p298, %s297, 1
      %s300 = smul.addr %s299, 8
      %s301 = scalar_lea.vmem %s0, %s300
      %p302 = pneg %p57
      %p303 = pneg %p54
      %s304 = sadd.s32 %s22, %s23
      %p305 = scmp.lt.s32.totalorder %s304, 0
      %s306 = scalar_select %p305, %s304, 0
      %s307 = smul.u32 2, %s306
      %p308 = scmp.lt.s32.totalorder %s307, 1
      %s309 = scalar_select %p308, %s307, 1
      %s310 = smul.addr %s309, 8
      %s311 = scalar_lea.vmem %s1, %s310
      %p312 = pneg %p89
      %p313 = pneg %p86
      %s314 = sadd.s32 %s22, %s23
      %p315 = scmp.lt.s32.totalorder %s314, 0
      %s316 = scalar_select %p315, %s314, 0
      %p317 = scmp.lt.s32.totalorder %s316, 0
      %s318 = scalar_select %p317, %s316, 0
      %s319 = smul.addr %s318, 2
      %s320 = scalar_lea.vmem %s2, %s319
      %p321 = pneg %p121
      %p322 = pneg %p118
      %p323 = pneg %p147
      %p324 = pneg %p144
      %p325 = scmp.lt.s32.totalorder %s22, 1
      %s326 = scalar_select %p325, %s22, 1
      %s327 = scalar_lea.vmem %s3, %s326
      %p328 = pneg %p173
      %p329 = pneg %p170
      %p330 = scmp.lt.s32.totalorder %s22, 1
      %s331 = scalar_select %p330, %s22, 1
      %s332 = smul.addr %s331, 2
      %s333 = scalar_lea.vmem %s4, %s332
      %p334 = pneg %p199
      %p335 = pneg %p196
      %p336 = scmp.lt.s32.totalorder %s22, 1
      %s337 = scalar_select %p336, %s22, 1
      %s338 = smul.addr %s337, 2
      %s339 = scalar_lea.vmem %s5, %s338
      %p340 = pneg %p225
      %p341 = pneg %p222
      %p342 = scmp.lt.s32.totalorder %s22, 1
      %s343 = scalar_select %p342, %s22, 1
      %s344 = smul.addr %s343, 2
      %s345 = scalar_lea.vmem %s6, %s344
      %s346 = sadd.s32 %s22, %s23
      %p347 = scmp.lt.s32.totalorder %s346, 0
      %s348 = scalar_select %p347, %s346, 0
      %s349 = smul.u32 2, %s348
      %p350 = scmp.lt.s32.totalorder %s349, 1
      %s351 = scalar_select %p350, %s349, 1
      %s352 = smul.addr %s351, 8
      %s353 = scalar_lea.vmem %s0, %s352
      %s354 = sadd.s32 %s22, %s23
      %p355 = scmp.lt.s32.totalorder %s354, 0
      %s356 = scalar_select %p355, %s354, 0
      %s357 = smul.u32 2, %s356
      %s358 = sadd.s32 %s22, %s23
      %p359 = scmp.lt.s32.totalorder %s358, 0
      %s360 = scalar_select %p359, %s358, 0
      %s361 = smul.u32 2, %s360
      %p362 = scmp.lt.s32.totalorder %s361, 1
      %s363 = scalar_select %p362, %s361, 1
      %s364 = smul.addr %s363, 8
      %s365 = scalar_lea.vmem %s1, %s364
      %s366 = sadd.s32 %s22, %s23
      %p367 = scmp.lt.s32.totalorder %s366, 0
      %s368 = scalar_select %p367, %s366, 0
      %s369 = smul.u32 2, %s368
      %s370 = sadd.s32 %s22, %s23
      %p371 = scmp.lt.s32.totalorder %s370, 0
      %s372 = scalar_select %p371, %s370, 0
      %p373 = scmp.lt.s32.totalorder %s372, 0
      %s374 = scalar_select %p373, %s372, 0
      %s375 = smul.addr %s374, 2
      %s376 = scalar_lea.vmem %s2, %s375
      %s377 = sadd.s32 %s22, %s23
      %p378 = scmp.lt.s32.totalorder %s377, 0
      %s379 = scalar_select %p378, %s377, 0
      %p380 = scmp.lt.s32.totalorder %s22, 1
      %s381 = scalar_select %p380, %s22, 1
      %s382 = scalar_lea.vmem %s3, %s381
      %p383 = scmp.lt.s32.totalorder %s22, 1
      %s384 = scalar_select %p383, %s22, 1
      %s385 = smul.addr %s384, 2
      %s386 = scalar_lea.vmem %s4, %s385
      %p387 = scmp.lt.s32.totalorder %s22, 1
      %s388 = scalar_select %p387, %s22, 1
      %s389 = smul.addr %s388, 2
      %s390 = scalar_lea.vmem %s5, %s389
      %p391 = scmp.lt.s32.totalorder %s22, 1
      %s392 = scalar_select %p391, %s22, 1
      %s393 = smul.addr %s392, 2
      %s394 = scalar_lea.vmem %s6, %s393
      %s395 = sadd.s32 %s22, %s23
      %p396 = scmp.eq.s32.totalorder %s23, 0
      // Predicated region
      $region33: #{compression_loss.1} parent=31 // pred_check
        %p397 = pneg %p396
      $region34: #{compression_loss.1} parent=31 // pred_check_branch
        %399 = sbr.rel (%p397) target = $region36
      $region35: #{compression_loss.1} parent=31 // pred_region
        %vm400 = vcmask 0
        %401 = vst.msk [vmem:[#allocation2] sm:$0x1] %vm400, 0.0
        %402 = vst.msk [vmem:[#allocation3] sm:$0x1] %vm400, -inf
        %403 = vst.msk [vmem:[#allocation3 + $0x1] sm:$0x1] %vm400, -inf
        %404 = vst.msk [vmem:[#allocation4] sm:$0x1] %vm400, 0.0
        %405 = vst.msk [vmem:[#allocation4 + $0x1] sm:$0x1] %vm400, 0.0
        %406 = vst.msk [vmem:[#allocation5] sm:$0x1] %vm400, 0.0
        %407 = vst.msk [vmem:[#allocation5 + $0x1] sm:$0x1] %vm400, 0.0
      $region36: #{compression_loss.1} parent=31 // pred_fallthru
        _
      %p408 = scmp.lt.s32.totalorder %s395, 1
      // Predicated region
      $region37: #{compression_loss.1} parent=31 // pred_check
        %p409 = pneg %p408
      $region38: #{compression_loss.1} parent=31 // pred_check_branch
        %411 = sbr.rel (%p409) target = $region40
      $region39: #{compression_loss.1} parent=31 // pred_region
        %v412 = vld [vmem:[%s353] sm:$0xff]
        %v413 = vld [vmem:[%s353 + $0x8] sm:$0xff]
        %v414 = vld [vmem:[%s365] sm:$0xff]
        %v415 = vld [vmem:[%s365 + $0x8] sm:$0xff]
        %v416 = vsub.f32 %v412, %v414
        %v417 = vsub.f32 %v413, %v415
        %v418 = vld [vmem:[#allocation2] sm:$0x1]
        %v419 = vmul.f32 %v416, %v416
        %v420 = vmul.f32 %v417, %v417
        %421 = vadd.xlane.f32.xlu0 %v419
        %v422 = vpop.xlane.xlu0 %421
        %423 = vadd.xlane.f32.xlu0 %v420
        %v424 = vpop.xlane.xlu0 %423
        %v425 = vadd.f32 %v422, %v424
        %v426 = vrot.slane %v425, 4
        %v427 = vadd.f32 %v425, %v426
        %v428 = vrot.slane %v427, 2
        %v429 = vadd.f32 %v427, %v428
        %v430 = vrot.slane %v429, 1
        %v431 = vadd.f32 %v429, %v430
        %v432 = vadd.f32 %v418, %v431
        %vm433 = vcmask 0
        %434 = vst.msk [vmem:[#allocation2] sm:$0x1] %vm433, %v432
        %v435 = vld [vmem:[%s376] sm:$0x3]
        %v436 = vld [vmem:[%s376 + $0x2] sm:$0x3]
        %vm437 = vcmask 1041408
        %v438 = vsel %vm437, %v435, -inf
        %439 = vmax.xlane.f32.xlu0 %v438
        %v440 = vpop.xlane.xlu0 %439
        %v441 = vsel %vm437, %v436, -inf
        %442 = vmax.xlane.f32.xlu0 %v441
        %v443 = vpop.xlane.xlu0 %442
        %v444 = vsel %vm437, %v440, -inf
        %v445 = vrot.slane %v444, 4
        %v446 = vmax.f32 %v444, %v445
        %v447 = vrot.slane %v446, 2
        %v448 = vmax.f32 %v446, %v447
        %v449 = vrot.slane %v448, 1
        %v450 = vmax.f32 %v448, %v449
        %v451 = vsel %vm437, %v443, -inf
        %v452 = vrot.slane %v451, 4
        %v453 = vmax.f32 %v451, %v452
        %v454 = vrot.slane %v453, 2
        %v455 = vmax.f32 %v453, %v454
        %v456 = vrot.slane %v455, 1
        %v457 = vmax.f32 %v455, %v456
        %v458 = vld [vmem:[#allocation3] sm:$0x1]
        %v459 = vld [vmem:[#allocation3 + $0x1] sm:$0x1]
        %v460 = vmax.f32 %v458, %v450
        %v461 = vmax.f32 %v459, %v457
        %v462 = vsub.f32 %v458, %v460
        %v463 = vsub.f32 %v459, %v461
        %v464 = vmul.f32 %v462, 1.442695
        %v465 = vpow.pop %v464
        %v466 = vmul.f32 %v463, 1.442695
        %v467 = vpow.pop %v466
        %v470 = vlaneseq
        %v471 = vshrl.u32 %v470, 7
        %v472 = vsub.s32 0, %v471
        %v473 = vrot.slane %v460, %v472
        %v474 = vlaneseq
        %v475 = vshrl.u32 %v474, 7
        %v476 = vsub.s32 0, %v475
        %v477 = vrot.slane %v461, %v476
        %478 = vset.pattern.permute.xlu0 0
        %479 = vperm.xlu0 %478, %v473
        %v480 = vpop.permute.xlu0 %479
        %482 = vset.pattern.permute.xlu0 0
        %483 = vperm.xlu0 %482, %v477
        %v484 = vpop.permute.xlu0 %483
        %v486 = vsub.f32 %v435, %v480
        %v487 = vsub.f32 %v436, %v484
        %v488 = vmul.f32 %v486, 1.442695
        %v489 = vpow.pop %v488
        %v490 = vmul.f32 %v487, 1.442695
        %v491 = vpow.pop %v490
        %v492 = vmul.f32 %v435, %v435
        %v493 = vmul.f32 %v436, %v436
        %v494 = vmul.f32 %v489, %v492
        %v495 = vmul.f32 %v491, %v493
        %v496 = vld [vmem:[#allocation4] sm:$0x1]
        %v497 = vld [vmem:[#allocation4 + $0x1] sm:$0x1]
        %v498 = vmul.f32 %v496, %v465
        %v499 = vmul.f32 %v497, %v467
        %v500 = vsel %vm437, %v489, 0.0
        %501 = vadd.xlane.f32.xlu0 %v500
        %v502 = vpop.xlane.xlu0 %501
        %v503 = vsel %vm437, %v491, 0.0
        %504 = vadd.xlane.f32.xlu0 %v503
        %v505 = vpop.xlane.xlu0 %504
        %v506 = vsel %vm437, %v502, 0.0
        %v507 = vrot.slane %v506, 4
        %v508 = vadd.f32 %v506, %v507
        %v509 = vrot.slane %v508, 2
        %v510 = vadd.f32 %v508, %v509
        %v511 = vrot.slane %v510, 1
        %v512 = vadd.f32 %v510, %v511
        %v513 = vsel %vm437, %v505, 0.0
        %v514 = vrot.slane %v513, 4
        %v515 = vadd.f32 %v513, %v514
        %v516 = vrot.slane %v515, 2
        %v517 = vadd.f32 %v515, %v516
        %v518 = vrot.slane %v517, 1
        %v519 = vadd.f32 %v517, %v518
        %v520 = vadd.f32 %v498, %v512
        %v521 = vadd.f32 %v499, %v519
        %522 = vst.msk [vmem:[#allocation4] sm:$0x1] %vm433, %v520
        %523 = vst.msk [vmem:[#allocation4 + $0x1] sm:$0x1] %vm433, %v521
        %v524 = vld [vmem:[#allocation5] sm:$0x1]
        %v525 = vld [vmem:[#allocation5 + $0x1] sm:$0x1]
        %v526 = vmul.f32 %v524, %v465
        %v527 = vmul.f32 %v525, %v467
        %v528 = vsel %vm437, %v494, 0.0
        %529 = vadd.xlane.f32.xlu0 %v528
        %v530 = vpop.xlane.xlu0 %529
        %v531 = vsel %vm437, %v495, 0.0
        %532 = vadd.xlane.f32.xlu0 %v531
        %v533 = vpop.xlane.xlu0 %532
        %v534 = vsel %vm437, %v530, 0.0
        %v535 = vrot.slane %v534, 4
        %v536 = vadd.f32 %v534, %v535
        %v537 = vrot.slane %v536, 2
        %v538 = vadd.f32 %v536, %v537
        %v539 = vrot.slane %v538, 1
        %v540 = vadd.f32 %v538, %v539
        %v541 = vsel %vm437, %v533, 0.0
        %v542 = vrot.slane %v541, 4
        %v543 = vadd.f32 %v541, %v542
        %v544 = vrot.slane %v543, 2
        %v545 = vadd.f32 %v543, %v544
        %v546 = vrot.slane %v545, 1
        %v547 = vadd.f32 %v545, %v546
        %v548 = vadd.f32 %v526, %v540
        %v549 = vadd.f32 %v527, %v547
        %550 = vst.msk [vmem:[#allocation5] sm:$0x1] %vm433, %v548
        %551 = vst.msk [vmem:[#allocation5 + $0x1] sm:$0x1] %vm433, %v549
        %552 = vst.msk [vmem:[#allocation3] sm:$0x1] %vm433, %v460
        %553 = vst.msk [vmem:[#allocation3 + $0x1] sm:$0x1] %vm433, %v461
      $region40: #{compression_loss.1} parent=31 // pred_fallthru
        _
      // Predicated region
      $region41: #{compression_loss.1} parent=31 // pred_check
        %p554 = pneg %p396
      $region42: #{compression_loss.1} parent=31 // pred_check_branch
        %556 = sbr.rel (%p554) target = $region44
      $region43: #{compression_loss.1} parent=31 // pred_region
        %v557 = vld [vmem:[#allocation2] sm:$0x1]
        %vm558 = vcmask 0
        %559 = vst.msk [vmem:[%s382] sm:$0x1] %vm558, %v557
        %v560 = vld [vmem:[#allocation3] sm:$0x1]
        %v561 = vld [vmem:[#allocation3 + $0x1] sm:$0x1]
        %562 = vst.msk [vmem:[%s386] sm:$0x1] %vm558, %v560
        %563 = vst.msk [vmem:[%s386 + $0x1] sm:$0x1] %vm558, %v561
        %v564 = vld [vmem:[#allocation4] sm:$0x1]
        %v565 = vld [vmem:[#allocation4 + $0x1] sm:$0x1]
        %566 = vst.msk [vmem:[%s390] sm:$0x1] %vm558, %v564
        %567 = vst.msk [vmem:[%s390 + $0x1] sm:$0x1] %vm558, %v565
        %v568 = vld [vmem:[#allocation5] sm:$0x1]
        %v569 = vld [vmem:[#allocation5 + $0x1] sm:$0x1]
        %570 = vst.msk [vmem:[%s394] sm:$0x1] %vm558, %v568
        %571 = vst.msk [vmem:[%s394 + $0x1] sm:$0x1] %vm558, %v569
      $region44: #{compression_loss.1} parent=31 // pred_fallthru
        _
      %p572 = scmp.lt.s32.totalorder %s22, 1
      %s573 = scalar_select %p572, %s22, 1
      %s574 = scalar_lea.vmem %s3, %s573
      %p575 = scmp.lt.s32.totalorder %s22, 1
      %s576 = scalar_select %p575, %s22, 1
      %s577 = smul.addr %s576, 2
      %s578 = scalar_lea.vmem %s4, %s577
      %p579 = scmp.lt.s32.totalorder %s22, 1
      %s580 = scalar_select %p579, %s22, 1
      %s581 = smul.addr %s580, 2
      %s582 = scalar_lea.vmem %s5, %s581
      %p583 = scmp.lt.s32.totalorder %s22, 1
      %s584 = scalar_select %p583, %s22, 1
      %s585 = smul.addr %s584, 2
      %s586 = scalar_lea.vmem %s6, %s585
      // Predicated region
      $region45: #{compression_loss.1} parent=31 // pred_check
        %p587 = pneg %p144
      $region46: #{compression_loss.1} parent=31 // pred_check_branch
        %589 = sbr.rel (%p587) target = $region48
      $region47: #{compression_loss.1} parent=31 // pred_region
        _
      $region48: #{compression_loss.1} parent=31 // pred_fallthru
        _
      // Predicated region
      $region49: #{compression_loss.1} parent=31 // pred_check
        %p590 = pneg %p170
      $region50: #{compression_loss.1} parent=31 // pred_check_branch
        %592 = sbr.rel (%p590) target = $region52
      $region51: #{compression_loss.1} parent=31 // pred_region
        _
      $region52: #{compression_loss.1} parent=31 // pred_fallthru
        _
      // Predicated region
      $region53: #{compression_loss.1} parent=31 // pred_check
        %p593 = pneg %p196
      $region54: #{compression_loss.1} parent=31 // pred_check_branch
        %595 = sbr.rel (%p593) target = $region56
      $region55: #{compression_loss.1} parent=31 // pred_region
        _
      $region56: #{compression_loss.1} parent=31 // pred_fallthru
        _
      // Predicated region
      $region57: #{compression_loss.1} parent=31 // pred_check
        %p596 = pneg %p222
      $region58: #{compression_loss.1} parent=31 // pred_check_branch
        %598 = sbr.rel (%p596) target = $region60
      $region59: #{compression_loss.1} parent=31 // pred_region
        _
      $region60: #{compression_loss.1} parent=31 // pred_fallthru
        _
    $region32: #{compression_loss.1} parent=5 // pred_fallthru
      _
    %p599 = scmp.le.s32.totalorder 2, %s13
    // Predicated region
    $region61: #{compression_loss.1} parent=5 // pred_check
      %p600 = pneg %p599
    $region62: #{compression_loss.1} parent=5 // pred_check_branch
      %602 = sbr.rel (%p600) target = $region64
    $region63: #{compression_loss.1} parent=5 // pred_region
      %s603 = ssub.s32 %s13, 2
      // Predicated region
      $region65: #{compression_loss.1} parent=63 // pred_check
        %p604 = pneg %p150
      $region66: #{compression_loss.1} parent=63 // pred_check_branch
        %606 = sbr.rel (%p604) target = $region68
      $region67: #{compression_loss.1} parent=63 // pred_region
        %p607 = scmp.lt.s32.totalorder %s24, 1
        %s608 = scalar_select %p607, %s24, 1
        %s609 = scalar_lea.vmem %s3, %s608
      $region68: #{compression_loss.1} parent=63 // pred_fallthru
        _
      // Predicated region
      $region69: #{compression_loss.1} parent=63 // pred_check
        %p610 = pneg %p176
      $region70: #{compression_loss.1} parent=63 // pred_check_branch
        %612 = sbr.rel (%p610) target = $region72
      $region71: #{compression_loss.1} parent=63 // pred_region
        %p613 = scmp.lt.s32.totalorder %s24, 1
        %s614 = scalar_select %p613, %s24, 1
        %s615 = smul.addr %s614, 2
        %s616 = scalar_lea.vmem %s4, %s615
      $region72: #{compression_loss.1} parent=63 // pred_fallthru
        _
      // Predicated region
      $region73: #{compression_loss.1} parent=63 // pred_check
        %p617 = pneg %p202
      $region74: #{compression_loss.1} parent=63 // pred_check_branch
        %619 = sbr.rel (%p617) target = $region76
      $region75: #{compression_loss.1} parent=63 // pred_region
        %p620 = scmp.lt.s32.totalorder %s24, 1
        %s621 = scalar_select %p620, %s24, 1
        %s622 = smul.addr %s621, 2
        %s623 = scalar_lea.vmem %s5, %s622
      $region76: #{compression_loss.1} parent=63 // pred_fallthru
        _
      // Predicated region
      $region77: #{compression_loss.1} parent=63 // pred_check
        %p624 = pneg %p228
      $region78: #{compression_loss.1} parent=63 // pred_check_branch
        %626 = sbr.rel (%p624) target = $region80
      $region79: #{compression_loss.1} parent=63 // pred_region
        %p627 = scmp.lt.s32.totalorder %s24, 1
        %s628 = scalar_select %p627, %s24, 1
        %s629 = smul.addr %s628, 2
        %s630 = scalar_lea.vmem %s6, %s629
      $region80: #{compression_loss.1} parent=63 // pred_fallthru
        _
    $region64: #{compression_loss.1} parent=5 // pred_fallthru
      _
  $region6: #{compression_loss.1} parent=0 // loop_footer
    %s17 = sadd.s32 1, %s13
  $region7: #{compression_loss.1} parent=0 // loop_footer_branch
    %12 = sbr.rel target = $region3
  $region8: #{compression_loss.1} parent=0 // loop_exit
    _

</llo_original>
